<compile_context>
chip_gen: v7x
topology: tpu7x:2x2x1
jax: 0.10.0
libtpu: 0.0.40
codegen_flags: <defaults>
</compile_context>

<pallas_src>
import functools

import jax
import jax.numpy as jnp
from jax.experimental import pallas as pl
from jax.experimental.pallas import tpu as pltpu

POS_WEIGHT = 1.5
NEG_WEIGHT = 1.0
ZERO_LABEL_WEIGHT = 1.05


def _round_up(n, m):
    return (n + m - 1) // m * m


def _balanced_bce_kernel(x_ref, t_ref, out_ref, acc_ref, *,
                         b_true, block_rows, inv_count, need_mask):
    # x_ref, t_ref : (tb, C) VMEM tiles in native dtype (upcast below)
    # out_ref      : (1, 1) f32 per-split partial sum (written on last j only)
    # acc_ref      : (tb, C) f32 VMEM scratch, resident across the j axis
    j = pl.program_id(1)

    @pl.when(j == 0)
    def _init():
        acc_ref[...] = jnp.zeros_like(acc_ref)

    x = x_ref[...].astype(jnp.float32)
    t = t_ref[...].astype(jnp.float32)
    tb, c = x.shape

    if need_mask:
        s = pl.program_id(0)
        nj = pl.num_programs(1)
        tile = s * nj + j                       # logical row-tile index
        row = jax.lax.broadcasted_iota(jnp.int32, (tb, c), 0) + tile * block_rows
        valid = row < b_true
        # Zero the DATA, not just the weight: the out-of-bounds region of an
        # edge block is undefined (may hold NaN/Inf) and NaN * 0 = NaN.
        x = jnp.where(valid, x, 0.0)
        t = jnp.where(valid, t, 0.0)
        valid_f = valid.astype(jnp.float32)
    else:
        valid_f = None

    # Per-sample weight: zero_label_weight where a row has no positive label.
    pos_per_sample = jnp.sum(t, axis=1, keepdims=True)           # (tb, 1)
    zero_row = (pos_per_sample == 0.0).astype(jnp.float32)
    sample_w = 1.0 + (ZERO_LABEL_WEIGHT - 1.0) * zero_row        # (tb, 1)

    # Arithmetic form of where(t == 1, pos_w, neg_w) (binary targets assumed).
    elem_w = NEG_WEIGHT + (POS_WEIGHT - NEG_WEIGHT) * t          # (tb, C)
    w = elem_w * sample_w
    if valid_f is not None:
        w = w * valid_f                                          # padded rows -> 0

    # Numerically stable binary_cross_entropy_with_logits, reduction='none':
    #   loss = max(x, 0) - x*t + log(1 + exp(-|x|))
    bce = jnp.maximum(x, 0.0) - x * t + jnp.log1p(jnp.exp(-jnp.abs(x)))

    acc_ref[...] += w * bce

    @pl.when(j == pl.num_programs(1) - 1)
    def _finalize():
        out_ref[...] = (jnp.sum(acc_ref[...], axis=(0, 1), keepdims=True)
                        * inv_count)


def balanced_bce_loss(inputs, targets, *, block_rows=None, num_core_splits=None):
    """inputs: (B, C) logits, targets: (B, C) in {0, 1}. Returns scalar mean loss.

    Inputs are streamed in their native dtypes (bf16 logits / int8 or bf16
    targets cut HBM traffic vs. f32) and upcast to f32 inside the kernel.
    """
    assert inputs.shape == targets.shape and inputs.ndim == 2
    b, c = inputs.shape
    x_item = jnp.dtype(inputs.dtype).itemsize
    t_item = jnp.dtype(targets.dtype).itemsize
    cp128 = _round_up(c, 128)                 # VMEM lane padding (layout only)

    # Generation-aware tile sizing / VMEM budget.
    try:
        vmem_cap = int(pltpu.get_tpu_info().vmem_capacity_bytes)
    except Exception:  # pragma: no cover - conservative fallback
        vmem_cap = 64 * 1024 * 1024
    big_vmem = vmem_cap >= 96 * 1024 * 1024   # v5e/v6e: 128 MiB; v7x: 64 MiB
    tile_bytes_target = (16 if big_vmem else 8) * 1024 * 1024

    row_bytes = cp128 * (x_item + t_item)
    if block_rows is None:
        cap = max(8, (tile_bytes_target // row_bytes) // 8 * 8)
        block_rows = min(_round_up(b, 8), cap)
    tb = _round_up(max(int(block_rows), 8), 8)

    nt = pl.cdiv(b, tb)                       # logical row tiles
    if num_core_splits is None:
        num_core_splits = 2 if nt >= 2 else 1  # v7x: one split per TensorCore
    ns = max(1, int(num_core_splits))
    nj = pl.cdiv(nt, ns)

    # Masking is needed iff the last tile is partial or overflow tiles exist.
    need_mask = (nt * tb != b) or (ns * nj != nt)

    def in_index_map(s, j):
        # Clamp overflow tiles to the last real tile; they are fully masked
        # in-kernel so the duplicated data contributes exactly zero.
        return (jnp.minimum(s * nj + j, nt - 1), 0)

    n = b * c
    kernel = functools.partial(
        _balanced_bce_kernel,
        b_true=b, block_rows=tb, inv_count=1.0 / float(n), need_mask=need_mask)

    vmem_need = tb * cp128 * (2 * x_item + 2 * t_item + 4) + (2 << 20)
    vmem_limit = int(min(max(vmem_need, 16 << 20), vmem_cap * 3 // 4))

    out = pl.pallas_call(
        kernel,
        out_shape=jax.ShapeDtypeStruct((ns, 1), jnp.float32),
        grid_spec=pltpu.PrefetchScalarGridSpec(
            num_scalar_prefetch=0,
            grid=(ns, nj),
            in_specs=[
                pl.BlockSpec((tb, c), in_index_map),
                pl.BlockSpec((tb, c), in_index_map),
            ],
            out_specs=pl.BlockSpec((1, 1), lambda s, j: (s, 0)),
            scratch_shapes=[pltpu.VMEM((tb, c), jnp.float32)],
        ),
        compiler_params=pltpu.CompilerParams(
            dimension_semantics=("parallel", "arbitrary"),
            vmem_limit_bytes=vmem_limit,
        ),
        cost_estimate=pl.CostEstimate(
            flops=12 * n,
            transcendentals=2 * n,
            bytes_accessed=n * (x_item + t_item) + 4 * ns),
    )(inputs, targets)

    # Sum the per-core partial means (each already divided by B*C).
    return jnp.sum(out)


def _reference(inputs, targets):
    # Pure-JAX reference mirroring the PyTorch module.
    x = inputs.astype(jnp.float32)
    t = targets.astype(jnp.float32)
    pos = t.sum(axis=1)
    sample_w = jnp.where(pos == 0, ZERO_LABEL_WEIGHT, 1.0)
    w = jnp.where(t == 1, POS_WEIGHT, NEG_WEIGHT) * sample_w[:, None]
    bce = jnp.maximum(x, 0.0) - x * t + jnp.log1p(jnp.exp(-jnp.abs(x)))
    return jnp.mean(w * bce)


if __name__ == "__main__":
    key = jax.random.PRNGKey(0)
    k1, k2 = jax.random.split(key)

    # Deliberately non-aligned shapes: exercises the edge-block row mask
    # without any wrapper-side padding.
    B, C = 20, 130
    logits = jax.random.normal(k1, (B, C), dtype=jnp.float32)
    targets = (jax.random.uniform(k2, (B, C)) > 0.7).astype(jnp.float32)
    # Force an all-zero-label row so the zero_label_weight path is exercised.
    targets = targets.at[0].set(0.0)
    ref = _reference(logits, targets)

    # Default tiling: single tile, partial edge block masked in-kernel.
    loss = balanced_bce_loss(logits, targets)
    jax.block_until_ready(loss)
    assert jnp.allclose(loss, ref, atol=1e-5, rtol=1e-5), (loss, ref)

    # Small row tiles -> 3 logical tiles, 2-way core split with one clamped
    # overflow tile: exercises grid accumulator, masking and clamping.
    loss2 = balanced_bce_loss(logits, targets, block_rows=8)
    jax.block_until_ready(loss2)
    assert jnp.allclose(loss2, ref, atol=1e-5, rtol=1e-5), (loss2, ref)

    # Fully aligned path (mask code is not emitted) with narrow input dtypes
    # (bf16 logits + int8 targets -> fewer streamed HBM bytes).
    B2, C2 = 32, 256
    logits2 = jax.random.normal(k1, (B2, C2), dtype=jnp.bfloat16)
    targets2 = (jax.random.uniform(k2, (B2, C2)) > 0.6).astype(jnp.int8)
    ref2 = _reference(logits2, targets2)
    loss3 = balanced_bce_loss(logits2, targets2, block_rows=8)
    jax.block_until_ready(loss3)
    assert jnp.allclose(loss3, ref2, atol=1e-4, rtol=1e-4), (loss3, ref2)

    print("KERNEL_OK")
</pallas_src>

<mosaic_0001>
module attributes {stable_mosaic.version = 11 : i64} {
  func.func @_balanced_bce_kernel(%arg0: i32, %arg1: i32, %arg2: memref<24x130xf32, #tpu.memory_space<vmem>>, %arg3: memref<24x130xf32, #tpu.memory_space<vmem>>, %arg4: memref<1x1xf32, #tpu.memory_space<vmem>>, %arg5: memref<24x130xf32, #tpu.memory_space<vmem>>) attributes {dimension_semantics = [#tpu.dimension_semantics<parallel>, #tpu.dimension_semantics<arbitrary>], iteration_bounds = array<i64: 1, 1>, scalar_prefetch = 0 : i64, scratch_operands = 1 : i64, tpu.core_type = #tpu.core_type<tc>, window_params = [{transform_indices = @transform_0, window_bounds = array<i64: 24, 130>}, {transform_indices = @transform_1, window_bounds = array<i64: 24, 130>}, {transform_indices = @transform_2, window_bounds = array<i64: 1, 1>}]} {
    %c0_i32 = arith.constant 0 : i32
    %0 = arith.cmpi eq, %arg1, %c0_i32 : i32
    %1 = arith.extui %0 : i1 to i32
    %c0_i32_0 = arith.constant 0 : i32
    %2 = arith.cmpi ne, %1, %c0_i32_0 : i32
    scf.if %2 {
      %cst_19 = arith.constant 0.000000e+00 : f32
      %53 = vector.broadcast %cst_19 : f32 to vector<24x130xf32>
      %c0_20 = arith.constant 0 : index
      %c0_21 = arith.constant 0 : index
      %54 = vector.load %arg5[%c0_20, %c0_21] : memref<24x130xf32, #tpu.memory_space<vmem>>, vector<24x130xf32>
      tpu.vector_store %arg5[%c0_20, %c0_21], %53 {strides = array<i32>} : memref<24x130xf32, #tpu.memory_space<vmem>>, vector<24x130xf32>,
    } else {
    }
    %c0 = arith.constant 0 : index
    %c0_1 = arith.constant 0 : index
    %3 = vector.load %arg2[%c0, %c0_1] : memref<24x130xf32, #tpu.memory_space<vmem>>, vector<24x130xf32>
    %c0_2 = arith.constant 0 : index
    %c0_3 = arith.constant 0 : index
    %4 = vector.load %arg3[%c0_2, %c0_3] : memref<24x130xf32, #tpu.memory_space<vmem>>, vector<24x130xf32>
    %c1_i32 = arith.constant 1 : i32
    %5 = arith.muli %arg0, %c1_i32 : i32
    %6 = arith.addi %5, %arg1 : i32
    %7 = tpu.iota {dimensions = array<i32: 0>} : vector<24x130xi32>
    %c24_i32 = arith.constant 24 : i32
    %8 = arith.muli %6, %c24_i32 : i32
    %9 = vector.broadcast %8 : i32 to vector<24x130xi32>
    %10 = arith.addi %7, %9 : vector<24x130xi32>
    %c20_i32 = arith.constant 20 : i32
    %11 = vector.broadcast %c20_i32 : i32 to vector<24x130xi32>
    %12 = arith.cmpi slt, %10, %11 : vector<24x130xi32>
    %cst = arith.constant 0.000000e+00 : f32
    %13 = vector.broadcast %cst : f32 to vector<24x130xf32>
    %14 = arith.select %12, %3, %13 : vector<24x130xi1>, vector<24x130xf32>
    %cst_4 = arith.constant 0.000000e+00 : f32
    %15 = vector.broadcast %cst_4 : f32 to vector<24x130xf32>
    %16 = arith.select %12, %4, %15 : vector<24x130xi1>, vector<24x130xf32>
    %17 = arith.extui %12 : vector<24x130xi1> to vector<24x130xi32>
    %18 = arith.sitofp %17 : vector<24x130xi32> to vector<24x130xf32>
    %cst_5 = arith.constant dense<0.000000e+00> : vector<24xf32>
    %19 = vector.multi_reduction <add>, %16, %cst_5 [1] : vector<24x130xf32> to vector<24xf32>
    %20 = vector.shape_cast %19 : vector<24xf32> to vector<24x1xf32>
    %cst_6 = arith.constant 0.000000e+00 : f32
    %21 = vector.broadcast %cst_6 : f32 to vector<24x1xf32>
    %22 = arith.cmpf oeq, %20, %21 : vector<24x1xf32>
    %23 = arith.extui %22 : vector<24x1xi1> to vector<24x1xi32>
    %24 = arith.sitofp %23 : vector<24x1xi32> to vector<24x1xf32>
    %cst_7 = arith.constant 5.000000e-02 : f32
    %25 = vector.broadcast %cst_7 : f32 to vector<24x1xf32>
    %26 = arith.mulf %25, %24 : vector<24x1xf32>
    %cst_8 = arith.constant 1.000000e+00 : f32
    %27 = vector.broadcast %cst_8 : f32 to vector<24x1xf32>
    %28 = arith.addf %27, %26 : vector<24x1xf32>
    %cst_9 = arith.constant 5.000000e-01 : f32
    %29 = vector.broadcast %cst_9 : f32 to vector<24x130xf32>
    %30 = arith.mulf %29, %16 : vector<24x130xf32>
    %cst_10 = arith.constant 1.000000e+00 : f32
    %31 = vector.broadcast %cst_10 : f32 to vector<24x130xf32>
    %32 = arith.addf %31, %30 : vector<24x130xf32>
    %33 = vector.broadcast %28 : vector<24x1xf32> to vector<24x130xf32>
    %34 = arith.mulf %32, %33 : vector<24x130xf32>
    %35 = arith.mulf %34, %18 : vector<24x130xf32>
    %cst_11 = arith.constant 0.000000e+00 : f32
    %36 = vector.broadcast %cst_11 : f32 to vector<24x130xf32>
    %37 = arith.maximumf %14, %36 : vector<24x130xf32>
    %38 = arith.mulf %14, %16 : vector<24x130xf32>
    %39 = arith.subf %37, %38 : vector<24x130xf32>
    %40 = math.absf %14 : vector<24x130xf32>
    %cst_12 = arith.constant 0.000000e+00 : f32
    %41 = vector.broadcast %cst_12 : f32 to vector<24x130xf32>
    %42 = arith.subf %41, %40 : vector<24x130xf32>
    %43 = math.exp %42 : vector<24x130xf32>
    %44 = math.log1p %43 : vector<24x130xf32>
    %45 = arith.addf %39, %44 : vector<24x130xf32>
    %c0_13 = arith.constant 0 : index
    %c0_14 = arith.constant 0 : index
    %46 = vector.load %arg5[%c0_13, %c0_14] : memref<24x130xf32, #tpu.memory_space<vmem>>, vector<24x130xf32>
    %47 = arith.mulf %35, %45 : vector<24x130xf32>
    %48 = arith.addf %46, %47 : vector<24x130xf32>
    %c0_15 = arith.constant 0 : index
    %c0_16 = arith.constant 0 : index
    %49 = vector.load %arg5[%c0_15, %c0_16] : memref<24x130xf32, #tpu.memory_space<vmem>>, vector<24x130xf32>
    tpu.vector_store %arg5[%c0_15, %c0_16], %48 {strides = array<i32>} : memref<24x130xf32, #tpu.memory_space<vmem>>, vector<24x130xf32>,
    %c0_i32_17 = arith.constant 0 : i32
    %50 = arith.cmpi eq, %arg1, %c0_i32_17 : i32
    %51 = arith.extui %50 : i1 to i32
    %c0_i32_18 = arith.constant 0 : i32
    %52 = arith.cmpi ne, %51, %c0_i32_18 : i32
    scf.if %52 {
      %c0_19 = arith.constant 0 : index
      %c0_20 = arith.constant 0 : index
      %53 = vector.load %arg5[%c0_19, %c0_20] : memref<24x130xf32, #tpu.memory_space<vmem>>, vector<24x130xf32>
      %54 = vector.shape_cast %53 : vector<24x130xf32> to vector<1x24x130xf32>
      %cst_21 = arith.constant dense<0.000000e+00> : vector<1xf32>
      %55 = vector.multi_reduction <add>, %54, %cst_21 [1, 2] : vector<1x24x130xf32> to vector<1xf32>
      %56 = vector.shape_cast %55 : vector<1xf32> to vector<1x1x1xf32>
      %57 = vector.extract %56[0, 0, 0] : f32 from vector<1x1x1xf32>
      %58 = vector.broadcast %57 : f32 to vector<1x1xf32>
      %cst_22 = arith.constant 3.84615385E-4 : f32
      %59 = vector.broadcast %cst_22 : f32 to vector<1x1xf32>
      %60 = arith.mulf %58, %59 : vector<1x1xf32>
      %c0_23 = arith.constant 0 : index
      %c0_24 = arith.constant 0 : index
      %61 = vector.load %arg4[%c0_23, %c0_24] : memref<1x1xf32, #tpu.memory_space<vmem>>, vector<1x1xf32>
      tpu.vector_store %arg4[%c0_23, %c0_24], %60 {strides = array<i32>} : memref<1x1xf32, #tpu.memory_space<vmem>>, vector<1x1xf32>,
    } else {
    }
    return
  }
  func.func @transform_0(%arg0: i32, %arg1: i32) -> (i32, i32) {
    %c1_i32 = arith.constant 1 : i32
    %0 = arith.muli %arg0, %c1_i32 : i32
    %1 = arith.addi %0, %arg1 : i32
    %c0_i32 = arith.constant 0 : i32
    %2 = arith.minsi %1, %c0_i32 : i32
    %c0_i32_0 = arith.constant 0 : i32
    %c0_i32_1 = arith.constant 0 : i32
    return %2, %c0_i32_0 : i32, i32
  }
  func.func @transform_1(%arg0: i32, %arg1: i32) -> (i32, i32) {
    %c1_i32 = arith.constant 1 : i32
    %0 = arith.muli %arg0, %c1_i32 : i32
    %1 = arith.addi %0, %arg1 : i32
    %c0_i32 = arith.constant 0 : i32
    %2 = arith.minsi %1, %c0_i32 : i32
    %c0_i32_0 = arith.constant 0 : i32
    %c0_i32_1 = arith.constant 0 : i32
    return %2, %c0_i32_0 : i32, i32
  }
  func.func @transform_2(%arg0: i32, %arg1: i32) -> (i32, i32) {
    %c0_i32 = arith.constant 0 : i32
    %c0_i32_0 = arith.constant 0 : i32
    return %arg0, %c0_i32 : i32, i32
  }
}

</mosaic_0001>

<llo_original>
// kernel: tpu_custom_call.1
$region0: #{tpu_custom_call.1}
  #allocation0 [shape = 'u32[]', space=smem, size = 0x4, offset = 0x4, fixed_abs, tag = 'smem constant byte address 0x4 - core index']
  #allocation1 [shape = 'u32[144,128]{1,0:T(1,128)}', space=vmem, size = 0x12000, scoped, tag = 'internal scratch']
  #allocation2 [shape = 'f32[24,130]{1,0:T(8,128)}', space=vmem, size = 0x6000, scoped, tag = 'scratch operand']
  %s0 = inlined_call_operand.hbm [shape: f32[20,130], index: 0, kind: input, shape index: {}]
  %s1 = inlined_call_operand.hbm [shape: f32[20,130], index: 1, kind: input, shape index: {}]
  %s2 = inlined_call_operand.hbm [shape: f32[1,1], index: 2, kind: output, shape index: {}]
  %s3 = sld [smem:[#allocation0]]
  $region34: #{tpu_custom_call.1} parent=0
    _
  %s5 = ssub.s32 1, %s3
  %s6 = scalar_select 0, %s5, %s3
  $region1: #{tpu_custom_call.1} parent=0
    #allocation3 [shape = 'u8[24576]{0}', space=vmem, size = 0x6000, scoped, tag = 'input window, operand 0, single buffered']
    #allocation4 [shape = 's32[1]{0}', space=sflag, size = 0x4, scoped, tag = 'scoped memory for tpu_custom_call.1']
    #allocation5 [shape = 's32[1]{0}', space=sflag, size = 0x4, scoped, tag = 'scoped memory for tpu_custom_call.1']
    #allocation6 [shape = 'u8[24576]{0}', space=vmem, size = 0x6000, scoped, tag = 'input window, operand 1, single buffered']
    #allocation7 [shape = 's32[1]{0}', space=sflag, size = 0x4, scoped, tag = 'scoped memory for tpu_custom_call.1']
    #allocation8 [shape = 'u8[512]{0}', space=vmem, size = 0x400, scoped, tag = 'output window, operand 0, single buffered']
    %7 = vsyncpa [#allocation4], 0
    %8 = vsyncpa [#allocation7], 0
    %9 = vsyncpa [#allocation5], 0
    // Predicated region
    $region2: #{tpu_custom_call.1} parent=1 // pred_check
      _
    $region3: #{tpu_custom_call.1} parent=1 // pred_check_branch
      %11 = sbr.rel (0) target = $region5
    $region4: #{tpu_custom_call.1} parent=1 // pred_region
      %s12 = sadd.s32 0, 0
      %p13 = scmp.lt.s32.totalorder %s12, 0
      %s14 = scalar_select %p13, %s12, 0
      %s15 = smul.u32 3, %s14
      %s17 = ssub.s32 768, 768
      %18 = vsyncadd [#allocation4], %s17
      %s19 = smul.addr %s15, 2
      %s20 = smul.addr %s19, 128
      %s21 = scalar_lea.hbm %s0, %s20
      %s22 = sshll.u32 [#allocation3], 4
      %s23 = int_to_ptr.vmem [resolvable:$true] %s22
      %28 = dma.hbm_to_vmem [thread:$0]  %s21, 768, %s23, [#allocation4], 256, 256, 16
    $region5: #{tpu_custom_call.1} parent=1 // pred_fallthru
      _
    // Predicated region
    $region6: #{tpu_custom_call.1} parent=1 // pred_check
      _
    $region7: #{tpu_custom_call.1} parent=1 // pred_check_branch
      %30 = sbr.rel (0) target = $region9
    $region8: #{tpu_custom_call.1} parent=1 // pred_region
      %s31 = sadd.s32 0, 0
      %p32 = scmp.lt.s32.totalorder %s31, 0
      %s33 = scalar_select %p32, %s31, 0
      %s34 = smul.u32 3, %s33
      %s36 = ssub.s32 768, 768
      %37 = vsyncadd [#allocation7], %s36
      %s38 = smul.addr %s34, 2
      %s39 = smul.addr %s38, 128
      %s40 = scalar_lea.hbm %s1, %s39
      %s41 = sshll.u32 [#allocation6], 4
      %s42 = int_to_ptr.vmem [resolvable:$true] %s41
      %47 = dma.hbm_to_vmem [thread:$0]  %s40, 768, %s42, [#allocation7], 256, 256, 16
    $region9: #{tpu_custom_call.1} parent=1 // pred_fallthru
      _
    // Predicated region
    $region10: #{tpu_custom_call.1} parent=1 // pred_check
      _
    $region11: #{tpu_custom_call.1} parent=1 // pred_check_branch
      %49 = sbr.rel (0) target = $region13
    $region12: #{tpu_custom_call.1} parent=1 // pred_region
      %50 = dma.done [#allocation4], 768
    $region13: #{tpu_custom_call.1} parent=1 // pred_fallthru
      _
    // Predicated region
    $region14: #{tpu_custom_call.1} parent=1 // pred_check
      _
    $region15: #{tpu_custom_call.1} parent=1 // pred_check_branch
      %52 = sbr.rel (0) target = $region17
    $region16: #{tpu_custom_call.1} parent=1 // pred_region
      %53 = dma.done [#allocation7], 768
    $region17: #{tpu_custom_call.1} parent=1 // pred_fallthru
      _
    %s54 = sadd.s32 0, 0
    %p55 = scmp.lt.s32.totalorder %s54, 0
    %s56 = scalar_select %p55, %s54, 0
    %s57 = smul.u32 3, %s56
    %s58 = sadd.s32 0, 0
    %p59 = scmp.lt.s32.totalorder %s58, 0
    %s60 = scalar_select %p59, %s58, 0
    %s61 = smul.u32 3, %s60
    %p62 = scmp.eq.s32.totalorder 0, 0
    // Predicated region
    $region18: #{tpu_custom_call.1} parent=1 // pred_check
      %p63 = pneg %p62
    $region19: #{tpu_custom_call.1} parent=1 // pred_check_branch
      %65 = sbr.rel (%p63) target = $region21
    $region20: #{tpu_custom_call.1} parent=1 // pred_region
      %66 = vst [vmem:[#allocation2] sm:$0xff] 0.0
      %vm67 = vcmask 15360
      %68 = vst.msk [vmem:[#allocation2 + $0x8] sm:$0xff] %vm67, 0.0
      %69 = vst [vmem:[#allocation2 + $0x10] sm:$0xff] 0.0
      %70 = vst.msk [vmem:[#allocation2 + $0x18] sm:$0xff] %vm67, 0.0
      %71 = vst [vmem:[#allocation2 + $0x20] sm:$0xff] 0.0
      %72 = vst.msk [vmem:[#allocation2 + $0x28] sm:$0xff] %vm67, 0.0
    $region21: #{tpu_custom_call.1} parent=1 // pred_fallthru
      _
    %v73 = vld [vmem:[#allocation3] sm:$0xff]
    %v74 = vld [vmem:[#allocation3 + $0x8] sm:$0xff]
    %v75 = vld [vmem:[#allocation3 + $0x10] sm:$0xff]
    %v76 = vld [vmem:[#allocation3 + $0x18] sm:$0xff]
    %v77 = vld [vmem:[#allocation3 + $0x20] sm:$0xff]
    %v78 = vld [vmem:[#allocation3 + $0x28] sm:$0xff]
    %v79 = vld [vmem:[#allocation6] sm:$0xff]
    %v80 = vld [vmem:[#allocation6 + $0x8] sm:$0xff]
    %v81 = vld [vmem:[#allocation6 + $0x10] sm:$0xff]
    %v82 = vld [vmem:[#allocation6 + $0x18] sm:$0xff]
    %v83 = vld [vmem:[#allocation6 + $0x20] sm:$0xff]
    %v84 = vld [vmem:[#allocation6 + $0x28] sm:$0xff]
    %s85 = sadd.s32 0, 0
    %v86 = vlaneseq
    %v87 = vshrl.u32 %v86, 7
    %v88 = vadd.s32 %v87, 8
    %v89 = vadd.s32 %v87, 16
    %s90 = smul.u32 %s85, 24
    %v91 = vstv %s90
    %v92 = vadd.s32 %v87, %v91
    %v93 = vadd.s32 %v88, %v91
    %v94 = vadd.s32 %v89, %v91
    %vm95 = vcmp.lt.s32.totalorder %v92, 20
    %vm96 = vcmp.lt.s32.totalorder %v93, 20
    %vm97 = vcmp.lt.s32.totalorder %v94, 20
    %v98 = vsel %vm95, %v73, 0.0
    %v99 = vsel %vm95, %v74, 0.0
    %v100 = vsel %vm96, %v75, 0.0
    %v101 = vsel %vm96, %v76, 0.0
    %v102 = vsel %vm97, %v77, 0.0
    %v103 = vsel %vm97, %v78, 0.0
    %v104 = vsel %vm95, %v79, 0.0
    %v105 = vsel %vm95, %v80, 0.0
    %v106 = vsel %vm96, %v81, 0.0
    %v107 = vsel %vm96, %v82, 0.0
    %v108 = vsel %vm97, %v83, 0.0
    %v109 = vsel %vm97, %v84, 0.0
    %v110 = vsel %vm95, 1, 0
    %v111 = vsel %vm96, 1, 0
    %v112 = vsel %vm97, 1, 0
    %v113 = vcvt.s32.f32 %v110
    %v114 = vcvt.s32.f32 %v111
    %v115 = vcvt.s32.f32 %v112
    %vm116 = vcmask 15360
    %v117 = vsel %vm116, %v105, 0.0
    %v118 = vadd.f32 %v104, %v117
    %119 = vadd.xlane.f32.xlu0 %v118
    %v120 = vpop.xlane.xlu0 %119
    %v121 = vsel %vm116, %v107, 0.0
    %v122 = vadd.f32 %v106, %v121
    %123 = vadd.xlane.f32.xlu0 %v122
    %v124 = vpop.xlane.xlu0 %123
    %v125 = vsel %vm116, %v109, 0.0
    %v126 = vadd.f32 %v108, %v125
    %127 = vadd.xlane.f32.xlu0 %v126
    %v128 = vpop.xlane.xlu0 %127
    %vm129 = vcmp.eq.f32.partialorder %v120, 0.0
    %vm130 = vcmp.eq.f32.partialorder %v124, 0.0
    %vm131 = vcmp.eq.f32.partialorder %v128, 0.0
    %v132 = vsel %vm129, 1, 0
    %v133 = vsel %vm130, 1, 0
    %v134 = vsel %vm131, 1, 0
    %v135 = vcvt.s32.f32 %v132
    %v136 = vcvt.s32.f32 %v133
    %v137 = vcvt.s32.f32 %v134
    %v138 = vmul.f32 %v135, 0.05
    %v139 = vmul.f32 %v136, 0.05
    %v140 = vmul.f32 %v137, 0.05
    %v141 = vadd.f32 %v138, 1.0
    %v142 = vadd.f32 %v139, 1.0
    %v143 = vadd.f32 %v140, 1.0
    %v144 = vmul.f32 %v104, 0.5
    %v145 = vmul.f32 %v105, 0.5
    %v146 = vmul.f32 %v106, 0.5
    %v147 = vmul.f32 %v107, 0.5
    %v148 = vmul.f32 %v108, 0.5
    %v149 = vmul.f32 %v109, 0.5
    %v150 = vadd.f32 %v144, 1.0
    %v151 = vadd.f32 %v145, 1.0
    %v152 = vadd.f32 %v146, 1.0
    %v153 = vadd.f32 %v147, 1.0
    %v154 = vadd.f32 %v148, 1.0
    %v155 = vadd.f32 %v149, 1.0
    %v156 = vmul.f32 %v150, %v141
    %v157 = vmul.f32 %v151, %v141
    %v158 = vmul.f32 %v152, %v142
    %v159 = vmul.f32 %v153, %v142
    %v160 = vmul.f32 %v154, %v143
    %v161 = vmul.f32 %v155, %v143
    %v162 = vmul.f32 %v156, %v113
    %v163 = vmul.f32 %v157, %v113
    %v164 = vmul.f32 %v158, %v114
    %v165 = vmul.f32 %v159, %v114
    %v166 = vmul.f32 %v160, %v115
    %v167 = vmul.f32 %v161, %v115
    %v168 = vmax.f32 %v98, 0.0
    %v169 = vmax.f32 %v99, 0.0
    %v170 = vmax.f32 %v100, 0.0
    %v171 = vmax.f32 %v101, 0.0
    %v172 = vmax.f32 %v102, 0.0
    %v173 = vmax.f32 %v103, 0.0
    %v174 = vmul.f32 %v98, %v104
    %v175 = vmul.f32 %v99, %v105
    %v176 = vmul.f32 %v100, %v106
    %v177 = vmul.f32 %v101, %v107
    %v178 = vmul.f32 %v102, %v108
    %v179 = vmul.f32 %v103, %v109
    %v180 = vsub.f32 %v168, %v174
    %v181 = vsub.f32 %v169, %v175
    %v182 = vsub.f32 %v170, %v176
    %v183 = vsub.f32 %v171, %v177
    %v184 = vsub.f32 %v172, %v178
    %v185 = vsub.f32 %v173, %v179
    %v186 = vand.u32 2147483647, %v98
    %v187 = vand.u32 2147483647, %v99
    %v188 = vand.u32 2147483647, %v100
    %v189 = vand.u32 2147483647, %v101
    %v190 = vand.u32 2147483647, %v102
    %v191 = vand.u32 2147483647, %v103
    %v192 = vsub.f32 0.0, %v186
    %v193 = vsub.f32 0.0, %v187
    %v194 = vsub.f32 0.0, %v188
    %v195 = vsub.f32 0.0, %v189
    %v196 = vsub.f32 0.0, %v190
    %v197 = vsub.f32 0.0, %v191
    %v198 = vmul.f32 %v192, 1.442695
    %v199 = vpow.pop %v198
    %v200 = vmul.f32 %v193, 1.442695
    %v201 = vpow.pop %v200
    %v202 = vmul.f32 %v194, 1.442695
    %v203 = vpow.pop %v202
    %v204 = vmul.f32 %v195, 1.442695
    %v205 = vpow.pop %v204
    %v206 = vmul.f32 %v196, 1.442695
    %v207 = vpow.pop %v206
    %v208 = vmul.f32 %v197, 1.442695
    %v209 = vpow.pop %v208
    %v210 = vadd.f32 %v199, 1.0
    %v211 = vlog2.pop %v210
    %v212 = vmul.f32 %v211, 0.6931472
    %v213 = vmul.f32 -0.5, %v199
    %v214 = vadd.f32 %v213, 1.0
    %v215 = vmul.f32 %v214, %v199
    %v216 = vand.u32 2147483647, %v199
    %vm217 = vcmp.lt.f32.partialorder %v216, 0.0004427343
    %v218 = vsel %vm217, %v215, %v212
    %v219 = vadd.f32 %v201, 1.0
    %v220 = vlog2.pop %v219
    %v221 = vmul.f32 %v220, 0.6931472
    %v222 = vmul.f32 -0.5, %v201
    %v223 = vadd.f32 %v222, 1.0
    %v224 = vmul.f32 %v223, %v201
    %v225 = vand.u32 2147483647, %v201
    %vm226 = vcmp.lt.f32.partialorder %v225, 0.0004427343
    %v227 = vsel %vm226, %v224, %v221
    %v228 = vadd.f32 %v203, 1.0
    %v229 = vlog2.pop %v228
    %v230 = vmul.f32 %v229, 0.6931472
    %v231 = vmul.f32 -0.5, %v203
    %v232 = vadd.f32 %v231, 1.0
    %v233 = vmul.f32 %v232, %v203
    %v234 = vand.u32 2147483647, %v203
    %vm235 = vcmp.lt.f32.partialorder %v234, 0.0004427343
    %v236 = vsel %vm235, %v233, %v230
    %v237 = vadd.f32 %v205, 1.0
    %v238 = vlog2.pop %v237
    %v239 = vmul.f32 %v238, 0.6931472
    %v240 = vmul.f32 -0.5, %v205
    %v241 = vadd.f32 %v240, 1.0
    %v242 = vmul.f32 %v241, %v205
    %v243 = vand.u32 2147483647, %v205
    %vm244 = vcmp.lt.f32.partialorder %v243, 0.0004427343
    %v245 = vsel %vm244, %v242, %v239
    %v246 = vadd.f32 %v207, 1.0
    %v247 = vlog2.pop %v246
    %v248 = vmul.f32 %v247, 0.6931472
    %v249 = vmul.f32 -0.5, %v207
    %v250 = vadd.f32 %v249, 1.0
    %v251 = vmul.f32 %v250, %v207
    %v252 = vand.u32 2147483647, %v207
    %vm253 = vcmp.lt.f32.partialorder %v252, 0.0004427343
    %v254 = vsel %vm253, %v251, %v248
    %v255 = vadd.f32 %v209, 1.0
    %v256 = vlog2.pop %v255
    %v257 = vmul.f32 %v256, 0.6931472
    %v258 = vmul.f32 -0.5, %v209
    %v259 = vadd.f32 %v258, 1.0
    %v260 = vmul.f32 %v259, %v209
    %v261 = vand.u32 2147483647, %v209
    %vm262 = vcmp.lt.f32.partialorder %v261, 0.0004427343
    %v263 = vsel %vm262, %v260, %v257
    %v264 = vadd.f32 %v180, %v218
    %v265 = vadd.f32 %v181, %v227
    %v266 = vadd.f32 %v182, %v236
    %v267 = vadd.f32 %v183, %v245
    %v268 = vadd.f32 %v184, %v254
    %v269 = vadd.f32 %v185, %v263
    %v270 = vld [vmem:[#allocation2] sm:$0xff]
    %v271 = vld [vmem:[#allocation2 + $0x8] sm:$0xff]
    %v272 = vld [vmem:[#allocation2 + $0x10] sm:$0xff]
    %v273 = vld [vmem:[#allocation2 + $0x18] sm:$0xff]
    %v274 = vld [vmem:[#allocation2 + $0x20] sm:$0xff]
    %v275 = vld [vmem:[#allocation2 + $0x28] sm:$0xff]
    %v276 = vmul.f32 %v162, %v264
    %v277 = vmul.f32 %v163, %v265
    %v278 = vmul.f32 %v164, %v266
    %v279 = vmul.f32 %v165, %v267
    %v280 = vmul.f32 %v166, %v268
    %v281 = vmul.f32 %v167, %v269
    %v282 = vadd.f32 %v270, %v276
    %v283 = vadd.f32 %v271, %v277
    %v284 = vadd.f32 %v272, %v278
    %v285 = vadd.f32 %v273, %v279
    %v286 = vadd.f32 %v274, %v280
    %v287 = vadd.f32 %v275, %v281
    %288 = vst [vmem:[#allocation2] sm:$0xff] %v282
    %289 = vst.msk [vmem:[#allocation2 + $0x8] sm:$0xff] %vm116, %v283
    %290 = vst [vmem:[#allocation2 + $0x10] sm:$0xff] %v284
    %291 = vst.msk [vmem:[#allocation2 + $0x18] sm:$0xff] %vm116, %v285
    %292 = vst [vmem:[#allocation2 + $0x20] sm:$0xff] %v286
    %293 = vst.msk [vmem:[#allocation2 + $0x28] sm:$0xff] %vm116, %v287
    // Predicated region
    $region22: #{tpu_custom_call.1} parent=1 // pred_check
      %p294 = pneg %p62
    $region23: #{tpu_custom_call.1} parent=1 // pred_check_branch
      %296 = sbr.rel (%p294) target = $region25
    $region24: #{tpu_custom_call.1} parent=1 // pred_region
      %v297 = vld [vmem:[#allocation2] sm:$0xff]
      %v298 = vld [vmem:[#allocation2 + $0x8] sm:$0xff]
      %v299 = vld [vmem:[#allocation2 + $0x10] sm:$0xff]
      %v300 = vld [vmem:[#allocation2 + $0x18] sm:$0xff]
      %v301 = vld [vmem:[#allocation2 + $0x20] sm:$0xff]
      %v302 = vld [vmem:[#allocation2 + $0x28] sm:$0xff]
      %v303 = vsel %vm116, %v298, 0.0
      %v304 = vadd.f32 %v297, %v303
      %v305 = vadd.f32 %v304, %v299
      %v306 = vsel %vm116, %v300, 0.0
      %v307 = vadd.f32 %v305, %v306
      %v308 = vadd.f32 %v307, %v301
      %v309 = vsel %vm116, %v302, 0.0
      %v310 = vadd.f32 %v308, %v309
      %311 = vadd.xlane.f32.xlu0 %v310
      %v312 = vpop.xlane.xlu0 %311
      %v313 = vrot.slane %v312, 4
      %v314 = vadd.f32 %v312, %v313
      %v315 = vrot.slane %v314, 2
      %v316 = vadd.f32 %v314, %v315
      %v317 = vrot.slane %v316, 1
      %v318 = vadd.f32 %v316, %v317
      %s319 = vtos %v318
      %v320 = vstv %s319
      %v321 = vmul.f32 %v320, 0.00038461538
      %vm322 = vcmask 0
      %323 = vst.msk [vmem:[#allocation8] sm:$0x1] %vm322, %v321
    $region25: #{tpu_custom_call.1} parent=1 // pred_fallthru
      _
    // Predicated region
    $region26: #{tpu_custom_call.1} parent=1 // pred_check
      _
    $region27: #{tpu_custom_call.1} parent=1 // pred_check_branch
      %325 = sbr.rel (0) target = $region29
    $region28: #{tpu_custom_call.1} parent=1 // pred_region
      %s327 = ssub.s32 16, 16
      %328 = vsyncadd [#allocation5], %s327
      %s330 = sshll.u32 [#allocation8], 4
      %s331 = int_to_ptr.vmem [resolvable:$true] %s330
      %333 = dma.vmem_to_hbm [thread:$0]  %s331, 16, %s2, [#allocation5]
    $region29: #{tpu_custom_call.1} parent=1 // pred_fallthru
      _
    // Predicated region
    $region30: #{tpu_custom_call.1} parent=1 // pred_check
      _
    $region31: #{tpu_custom_call.1} parent=1 // pred_check_branch
      %335 = sbr.rel (0) target = $region33
    $region32: #{tpu_custom_call.1} parent=1 // pred_region
      %336 = dma.done [#allocation5], 16
    $region33: #{tpu_custom_call.1} parent=1 // pred_fallthru
      _
    %337 = vsyncpa [#allocation4], 1
    %338 = vsyncpa [#allocation7], 1
    %339 = vsyncpa [#allocation5], 1

</llo_original>
